<compile_context>
chip_gen: v7x
topology: tpu7x:2x2x1
jax: 0.10.0
libtpu: 0.0.40
codegen_flags: <defaults>
</compile_context>

<pallas_src>
import jax
import jax.numpy as jnp
from jax.experimental import pallas as pl
from jax.experimental.pallas import tpu as pltpu

H_SIZE = 64            # critic / actor hidden size (fixed by the module)
PACK_W = 2 * H_SIZE    # 128: packed lane width for the hidden slabs
MAX_TILE_B = 2048      # cap so the tile is safe on v7x's 64 MiB VMEM
SPLIT_B = 512          # batches above this get >=2 tiles (v7x dual-TC sharding)


def _round_up(x, m):
    return ((x + m - 1) // m) * m


# ----------------------------------------------------------------------------
# Kernel: fused Policy.act (deterministic) forward pass.
#   Packed output layout per row: [0:ACT] action(=mean), [ACT] value,
#   [ACT+1] action_log_prob, remaining lanes zero.
# ----------------------------------------------------------------------------
def policy_act_kernel(x_ref, w1_ref, w2_ref, w3_ref, wm_ref, w4_ref, b_ref,
                      out_ref):
    out_w = out_ref.shape[-1]
    biases = b_ref[...]                      # [8, 128] resident bias pack
    b1 = biases[0:1, :]                      # [1, 128]
    b2 = biases[1:2, :]                      # [1, 128]
    b3 = biases[2:3, :H_SIZE]                # [1, 64]
    bo = biases[3:4, :out_w]                 # [1, OUT_W]

    x = x_ref[...]

    # stage 1: actor hidden (cols 0:64) | critic layer-1 (cols 64:128)
    h1 = jnp.tanh(
        jnp.dot(x, w1_ref[...], preferred_element_type=jnp.float32) + b1)
    # stage 2: actor output a (cols 0:ACT) | critic layer-2 (cols 64:128)
    h2 = jnp.tanh(
        jnp.dot(h1, w2_ref[...], preferred_element_type=jnp.float32) + b2)
    # stage 3: critic layer-3 only -> [TB, 64]; the actor/mean path skips the
    # tanh entirely (no wasted EUP work on lanes that feed zero weights).
    h3 = jnp.tanh(
        jnp.dot(h2, w3_ref[...], preferred_element_type=jnp.float32) + b3)

    # final narrow slab: mean (cols 0:ACT) + value (col ACT) + logp (col ACT+1)
    mean_part = jnp.dot(h2, wm_ref[...], preferred_element_type=jnp.float32)
    val_part = jnp.dot(h3, w4_ref[...], preferred_element_type=jnp.float32)
    out_ref[...] = mean_part + val_part + bo


# ----------------------------------------------------------------------------
# Wrapper: batch-tiled pallas_call with resident weights + narrow packed output.
# ----------------------------------------------------------------------------
def policy_act(x, fused, *, tile_b=1024):
    B, obs_dim = x.shape
    act_dim = fused["act_dim"]
    out_w = fused["out_w"]

    # Tile choice: big tiles to amortize per-step overhead, capped for v7x
    # VMEM, and >= 2 tiles for mid-sized batches so both v7x TensorCores work.
    tile_b = min(max(8, (tile_b // 8) * 8), MAX_TILE_B)
    if B <= tile_b:
        tb = _round_up(pl.cdiv(B, 2), 8) if B > SPLIT_B else _round_up(B, 8)
    elif B <= 2 * tile_b:
        tb = _round_up(pl.cdiv(B, 2), 8)
    else:
        tb = tile_b
    b_padded = _round_up(B, tb)
    if b_padded != B:
        x = jnp.pad(x, ((0, b_padded - B), (0, 0)))
    grid = (b_padded // tb,)

    def resident(shape):
        # Constant index map => weights stay VMEM-resident across the grid.
        return pl.BlockSpec(shape, lambda i: (0, 0))

    # Advisory cost estimate so XLA schedules the custom call sensibly.
    flops = 2 * b_padded * (obs_dim * PACK_W + PACK_W * PACK_W
                            + PACK_W * H_SIZE + PACK_W * out_w
                            + H_SIZE * out_w)
    transcendentals = b_padded * (2 * PACK_W + H_SIZE)
    bytes_accessed = 4 * (b_padded * (obs_dim + out_w)
                          + obs_dim * PACK_W + PACK_W * PACK_W
                          + PACK_W * H_SIZE + PACK_W * out_w
                          + H_SIZE * out_w + 8 * PACK_W)

    packed = pl.pallas_call(
        policy_act_kernel,
        out_shape=jax.ShapeDtypeStruct((b_padded, out_w), jnp.float32),
        grid_spec=pltpu.PrefetchScalarGridSpec(
            num_scalar_prefetch=0,
            grid=grid,
            in_specs=[
                pl.BlockSpec((tb, obs_dim), lambda i: (i, 0)),
                resident((obs_dim, PACK_W)),
                resident((PACK_W, PACK_W)),
                resident((PACK_W, H_SIZE)),
                resident((PACK_W, out_w)),
                resident((H_SIZE, out_w)),
                resident((8, PACK_W)),
            ],
            out_specs=pl.BlockSpec((tb, out_w), lambda i: (i, 0)),
        ),
        compiler_params=pltpu.CompilerParams(
            dimension_semantics=("parallel",),
        ),
        cost_estimate=pl.CostEstimate(
            flops=flops,
            transcendentals=transcendentals,
            bytes_accessed=bytes_accessed,
        ),
    )(
        x,
        fused["W1"], fused["W2"], fused["W3"], fused["WM"], fused["W4"],
        fused["B"],
    )

    packed = packed[:B]
    action = packed[:, :act_dim]
    value = packed[:, act_dim:act_dim + 1]
    logp = packed[:, act_dim + 1:act_dim + 2]
    return value, action, logp


# ----------------------------------------------------------------------------
# Parameter fusion: concat / block-diagonal packing of the module's weights.
# ----------------------------------------------------------------------------
def fuse_params(p):
    act_dim = p["wm"].shape[1]
    assert act_dim <= H_SIZE, "packing assumes action_dim <= 64"
    H = H_SIZE
    out_w = max(8, _round_up(act_dim + 2, 8))
    f32 = jnp.float32

    # stage 1: [wa1 || wc1]
    W1 = jnp.concatenate([p["wa1"], p["wc1"]], axis=1)               # [OBS,128]

    # stage 2: blockdiag(wa2 -> cols 0:ACT, wc2 -> cols 64:128)
    W2 = (jnp.zeros((PACK_W, PACK_W), f32)
          .at[:H, :act_dim].set(p["wa2"])
          .at[H:, H:].set(p["wc2"]))

    # stage 3 (critic layer 3 only): wc3 driven by h2 cols 64:128
    W3 = jnp.zeros((PACK_W, H), f32).at[H:, :].set(p["wc3"])         # [128,64]

    # output stage: mean (wm) in cols 0:ACT, value head (wc4) in col ACT
    WM = jnp.zeros((PACK_W, out_w), f32).at[:act_dim, :act_dim].set(p["wm"])
    W4 = jnp.zeros((H, out_w), f32).at[:, act_dim:act_dim + 1].set(p["wc4"])

    # closed-form log-prob for action == mean
    logp_const = -(jnp.sum(p["logstd"]) + 0.5 * act_dim * jnp.log(2.0 * jnp.pi))

    # consolidated bias pack: row0=b1, row1=b2, row2=bc3, row3=(bm|bc4|logp)
    B_all = jnp.zeros((8, PACK_W), f32)
    B_all = B_all.at[0, :H].set(p["ba1"][0]).at[0, H:].set(p["bc1"][0])
    B_all = B_all.at[1, :act_dim].set(p["ba2"][0]).at[1, H:].set(p["bc2"][0])
    B_all = B_all.at[2, :H].set(p["bc3"][0])
    B_all = (B_all.at[3, :act_dim].set(p["bm"][0])
             .at[3, act_dim].set(p["bc4"][0, 0])
             .at[3, act_dim + 1].set(logp_const))

    return dict(W1=W1, W2=W2, W3=W3, WM=WM, W4=W4, B=B_all,
                act_dim=act_dim, out_w=out_w)


# ----------------------------------------------------------------------------
# Deterministic parameter construction (orthogonal init, zero bias), mirroring
# init_t_ (tanh gain = 5/3) for critic/actor and gain=1 for the dist mean.
# ----------------------------------------------------------------------------
def make_params(key, obs_dim, act_dim, h_size=H_SIZE):
    gains = {"tanh": 5.0 / 3.0, "linear": 1.0}
    keys = jax.random.split(key, 8)
    orth = jax.nn.initializers.orthogonal

    def lin(k, fan_in, fan_out, gain):
        # stored as [in, out] so the math is x @ W + b
        w = orth(scale=gain)(k, (fan_in, fan_out), jnp.float32)
        b = jnp.zeros((1, fan_out), jnp.float32)
        return w, b

    wa1, ba1 = lin(keys[0], obs_dim, h_size, gains["tanh"])
    wa2, ba2 = lin(keys[1], h_size, act_dim, gains["tanh"])
    wm, bm = lin(keys[2], act_dim, act_dim, gains["linear"])
    logstd = jnp.zeros((1, act_dim), jnp.float32)          # AddBias init 0
    wc1, bc1 = lin(keys[3], obs_dim, h_size, gains["tanh"])
    wc2, bc2 = lin(keys[4], h_size, h_size, gains["tanh"])
    wc3, bc3 = lin(keys[5], h_size, h_size, gains["tanh"])
    wc4, bc4 = lin(keys[6], h_size, 1, gains["tanh"])

    return dict(
        wa1=wa1, ba1=ba1, wa2=wa2, ba2=ba2,
        wm=wm, bm=bm, logstd=logstd,
        wc1=wc1, bc1=bc1, wc2=wc2, bc2=bc2,
        wc3=wc3, bc3=bc3, wc4=wc4, bc4=bc4,
    )


# ----------------------------------------------------------------------------
# Pure-JAX reference (unfused module math) for correctness check.
# ----------------------------------------------------------------------------
def policy_act_ref(x, p):
    h = jnp.tanh(x @ p["wa1"] + p["ba1"])
    a = jnp.tanh(h @ p["wa2"] + p["ba2"])
    mean = a @ p["wm"] + p["bm"]
    action = mean
    std = jnp.exp(p["logstd"])
    lp = -0.5 * ((action - mean) / std) ** 2 - p["logstd"] - 0.5 * jnp.log(2.0 * jnp.pi)
    logp = jnp.sum(lp, axis=-1, keepdims=True)
    c = jnp.tanh(x @ p["wc1"] + p["bc1"])
    c = jnp.tanh(c @ p["wc2"] + p["bc2"])
    c = jnp.tanh(c @ p["wc3"] + p["bc3"])
    value = c @ p["wc4"] + p["bc4"]
    return value, action, logp


# TODO(synk): stochastic dist.sample() path (non-deterministic act, with the
# clamp to [-1, 1]) is not implemented in-kernel; only dist.mode()
# (deterministic=True) is covered.

if __name__ == "__main__":
    B, OBS_DIM, ACT_DIM = 8, 16, 8

    key = jax.random.PRNGKey(0)
    kx, kp = jax.random.split(key)
    x = jax.random.normal(kx, (B, OBS_DIM), jnp.float32)
    params = make_params(kp, OBS_DIM, ACT_DIM)
    fused = fuse_params(params)

    value, action, logp = jax.block_until_ready(policy_act(x, fused))

    v_ref, a_ref, lp_ref = policy_act_ref(x, params)
    assert jnp.allclose(value, v_ref, atol=1e-5, rtol=1e-5)
    assert jnp.allclose(action, a_ref, atol=1e-5, rtol=1e-5)
    assert jnp.allclose(logp, lp_ref, atol=1e-5, rtol=1e-5)

    print("KERNEL_OK")
</pallas_src>

<mosaic_0001>
module attributes {stable_mosaic.version = 11 : i64} {
  func.func @policy_act_kernel(%arg0: i32, %arg1: memref<8x16xf32, #tpu.memory_space<vmem>>, %arg2: memref<16x128xf32, #tpu.memory_space<vmem>>, %arg3: memref<128x128xf32, #tpu.memory_space<vmem>>, %arg4: memref<128x64xf32, #tpu.memory_space<vmem>>, %arg5: memref<128x16xf32, #tpu.memory_space<vmem>>, %arg6: memref<64x16xf32, #tpu.memory_space<vmem>>, %arg7: memref<8x128xf32, #tpu.memory_space<vmem>>, %arg8: memref<8x16xf32, #tpu.memory_space<vmem>>) attributes {dimension_semantics = [#tpu.dimension_semantics<parallel>], iteration_bounds = array<i64: 1>, scalar_prefetch = 0 : i64, scratch_operands = 0 : i64, tpu.core_type = #tpu.core_type<tc>, window_params = [{transform_indices = @transform_0, window_bounds = array<i64: 8, 16>}, {pipeline_mode = #tpu.pipeline_mode<synchronous>, transform_indices = @transform_1, window_bounds = array<i64: 16, 128>}, {pipeline_mode = #tpu.pipeline_mode<synchronous>, transform_indices = @transform_2, window_bounds = array<i64: 128, 128>}, {pipeline_mode = #tpu.pipeline_mode<synchronous>, transform_indices = @transform_3, window_bounds = array<i64: 128, 64>}, {pipeline_mode = #tpu.pipeline_mode<synchronous>, transform_indices = @transform_4, window_bounds = array<i64: 128, 16>}, {pipeline_mode = #tpu.pipeline_mode<synchronous>, transform_indices = @transform_5, window_bounds = array<i64: 64, 16>}, {pipeline_mode = #tpu.pipeline_mode<synchronous>, transform_indices = @transform_6, window_bounds = array<i64: 8, 128>}, {transform_indices = @transform_7, window_bounds = array<i64: 8, 16>}]} {
    %c0 = arith.constant 0 : index
    %c0_0 = arith.constant 0 : index
    %0 = vector.load %arg7[%c0, %c0_0] : memref<8x128xf32, #tpu.memory_space<vmem>>, vector<8x128xf32>
    %1 = vector.extract_strided_slice %0 {offsets = [0, 0], sizes = [1, 128], strides = [1, 1]} : vector<8x128xf32> to vector<1x128xf32>
    %2 = vector.extract_strided_slice %0 {offsets = [1, 0], sizes = [1, 128], strides = [1, 1]} : vector<8x128xf32> to vector<1x128xf32>
    %3 = vector.extract_strided_slice %0 {offsets = [2, 0], sizes = [1, 64], strides = [1, 1]} : vector<8x128xf32> to vector<1x64xf32>
    %4 = vector.extract_strided_slice %0 {offsets = [3, 0], sizes = [1, 16], strides = [1, 1]} : vector<8x128xf32> to vector<1x16xf32>
    %c0_1 = arith.constant 0 : index
    %c0_2 = arith.constant 0 : index
    %5 = vector.load %arg1[%c0_1, %c0_2] : memref<8x16xf32, #tpu.memory_space<vmem>>, vector<8x16xf32>
    %c0_3 = arith.constant 0 : index
    %c0_4 = arith.constant 0 : index
    %6 = vector.load %arg2[%c0_3, %c0_4] : memref<16x128xf32, #tpu.memory_space<vmem>>, vector<16x128xf32>
    %cst = arith.constant dense<0.000000e+00> : vector<8x128xf32>
    %7 = tpu.matmul %5, %6, %cst {dimension_numbers = #tpu.dot_dimension_numbers<[1], [0], [0], [1], [0, 0, 1, 1], [], []>} : vector<8x16xf32>, vector<16x128xf32>, vector<8x128xf32> -> vector<8x128xf32>
    %8 = vector.broadcast %1 : vector<1x128xf32> to vector<8x128xf32>
    %9 = arith.addf %7, %8 : vector<8x128xf32>
    %10 = math.tanh %9 : vector<8x128xf32>
    %c0_5 = arith.constant 0 : index
    %c0_6 = arith.constant 0 : index
    %11 = vector.load %arg3[%c0_5, %c0_6] : memref<128x128xf32, #tpu.memory_space<vmem>>, vector<128x128xf32>
    %cst_7 = arith.constant dense<0.000000e+00> : vector<8x128xf32>
    %12 = tpu.matmul %10, %11, %cst_7 {dimension_numbers = #tpu.dot_dimension_numbers<[1], [0], [0], [1], [0, 0, 1, 1], [], []>} : vector<8x128xf32>, vector<128x128xf32>, vector<8x128xf32> -> vector<8x128xf32>
    %13 = vector.broadcast %2 : vector<1x128xf32> to vector<8x128xf32>
    %14 = arith.addf %12, %13 : vector<8x128xf32>
    %15 = math.tanh %14 : vector<8x128xf32>
    %c0_8 = arith.constant 0 : index
    %c0_9 = arith.constant 0 : index
    %16 = vector.load %arg4[%c0_8, %c0_9] : memref<128x64xf32, #tpu.memory_space<vmem>>, vector<128x64xf32>
    %cst_10 = arith.constant dense<0.000000e+00> : vector<8x64xf32>
    %17 = tpu.matmul %15, %16, %cst_10 {dimension_numbers = #tpu.dot_dimension_numbers<[1], [0], [0], [1], [0, 0, 1, 1], [], []>} : vector<8x128xf32>, vector<128x64xf32>, vector<8x64xf32> -> vector<8x64xf32>
    %18 = vector.broadcast %3 : vector<1x64xf32> to vector<8x64xf32>
    %19 = arith.addf %17, %18 : vector<8x64xf32>
    %20 = math.tanh %19 : vector<8x64xf32>
    %c0_11 = arith.constant 0 : index
    %c0_12 = arith.constant 0 : index
    %21 = vector.load %arg5[%c0_11, %c0_12] : memref<128x16xf32, #tpu.memory_space<vmem>>, vector<128x16xf32>
    %cst_13 = arith.constant dense<0.000000e+00> : vector<8x16xf32>
    %22 = tpu.matmul %15, %21, %cst_13 {dimension_numbers = #tpu.dot_dimension_numbers<[1], [0], [0], [1], [0, 0, 1, 1], [], []>} : vector<8x128xf32>, vector<128x16xf32>, vector<8x16xf32> -> vector<8x16xf32>
    %c0_14 = arith.constant 0 : index
    %c0_15 = arith.constant 0 : index
    %23 = vector.load %arg6[%c0_14, %c0_15] : memref<64x16xf32, #tpu.memory_space<vmem>>, vector<64x16xf32>
    %cst_16 = arith.constant dense<0.000000e+00> : vector<8x16xf32>
    %24 = tpu.matmul %20, %23, %cst_16 {dimension_numbers = #tpu.dot_dimension_numbers<[1], [0], [0], [1], [0, 0, 1, 1], [], []>} : vector<8x64xf32>, vector<64x16xf32>, vector<8x16xf32> -> vector<8x16xf32>
    %25 = arith.addf %22, %24 : vector<8x16xf32>
    %26 = vector.broadcast %4 : vector<1x16xf32> to vector<8x16xf32>
    %27 = arith.addf %25, %26 : vector<8x16xf32>
    %c0_17 = arith.constant 0 : index
    %c0_18 = arith.constant 0 : index
    %28 = vector.load %arg8[%c0_17, %c0_18] : memref<8x16xf32, #tpu.memory_space<vmem>>, vector<8x16xf32>
    tpu.vector_store %arg8[%c0_17, %c0_18], %27 {strides = array<i32>} : memref<8x16xf32, #tpu.memory_space<vmem>>, vector<8x16xf32>,
    return
  }
  func.func @transform_0(%arg0: i32) -> (i32, i32) {
    %c0_i32 = arith.constant 0 : i32
    %c0_i32_0 = arith.constant 0 : i32
    return %arg0, %c0_i32 : i32, i32
  }
  func.func @transform_1(%arg0: i32) -> (i32, i32) {
    %c0_i32 = arith.constant 0 : i32
    %c0_i32_0 = arith.constant 0 : i32
    %c0_i32_1 = arith.constant 0 : i32
    return %c0_i32, %c0_i32_0 : i32, i32
  }
  func.func @transform_2(%arg0: i32) -> (i32, i32) {
    %c0_i32 = arith.constant 0 : i32
    %c0_i32_0 = arith.constant 0 : i32
    %c0_i32_1 = arith.constant 0 : i32
    return %c0_i32, %c0_i32_0 : i32, i32
  }
  func.func @transform_3(%arg0: i32) -> (i32, i32) {
    %c0_i32 = arith.constant 0 : i32
    %c0_i32_0 = arith.constant 0 : i32
    %c0_i32_1 = arith.constant 0 : i32
    return %c0_i32, %c0_i32_0 : i32, i32
  }
  func.func @transform_4(%arg0: i32) -> (i32, i32) {
    %c0_i32 = arith.constant 0 : i32
    %c0_i32_0 = arith.constant 0 : i32
    %c0_i32_1 = arith.constant 0 : i32
    return %c0_i32, %c0_i32_0 : i32, i32
  }
  func.func @transform_5(%arg0: i32) -> (i32, i32) {
    %c0_i32 = arith.constant 0 : i32
    %c0_i32_0 = arith.constant 0 : i32
    %c0_i32_1 = arith.constant 0 : i32
    return %c0_i32, %c0_i32_0 : i32, i32
  }
  func.func @transform_6(%arg0: i32) -> (i32, i32) {
    %c0_i32 = arith.constant 0 : i32
    %c0_i32_0 = arith.constant 0 : i32
    %c0_i32_1 = arith.constant 0 : i32
    return %c0_i32, %c0_i32_0 : i32, i32
  }
  func.func @transform_7(%arg0: i32) -> (i32, i32) {
    %c0_i32 = arith.constant 0 : i32
    %c0_i32_0 = arith.constant 0 : i32
    return %arg0, %c0_i32 : i32, i32
  }
}

</mosaic_0001>

<llo_original>
// kernel: tpu_custom_call.1
$region0: #{tpu_custom_call.1}
  #allocation0 [shape = 'u32[]', space=smem, size = 0x4, offset = 0x4, fixed_abs, tag = 'smem constant byte address 0x4 - core index']
  #allocation1 [shape = 'u32[144,128]{1,0:T(1,128)}', space=vmem, size = 0x12000, scoped, tag = 'internal scratch']
  %s0 = inlined_call_operand.vmem [shape: f32[8,16], index: 0, kind: input, shape index: {}]
  %s1 = inlined_call_operand.vmem [shape: f32[16,128], index: 1, kind: input, shape index: {}]
  %s2 = inlined_call_operand.vmem [shape: f32[128,128], index: 2, kind: input, shape index: {}]
  %s3 = inlined_call_operand.vmem [shape: f32[128,64], index: 3, kind: input, shape index: {}]
  %s4 = inlined_call_operand.vmem [shape: f32[128,16], index: 4, kind: input, shape index: {}]
  %s5 = inlined_call_operand.vmem [shape: f32[64,16], index: 5, kind: input, shape index: {}]
  %s6 = inlined_call_operand.vmem [shape: f32[8,128], index: 6, kind: input, shape index: {}]
  %s7 = inlined_call_operand.hbm [shape: f32[8,16], index: 7, kind: output, shape index: {}]
  %s8 = sld [smem:[#allocation0]]
  $region38: #{tpu_custom_call.1} parent=0
    _
  %s10 = ssub.s32 1, %s8
  %s11 = scalar_select 0, %s10, %s8
  $region1: #{tpu_custom_call.1} parent=0
    #allocation2 [shape = 'u8[4096]{0}', space=vmem, size = 0x1000, scoped, tag = 'output window, operand 0, single buffered']
    #allocation3 [shape = 's32[1]{0}', space=sflag, size = 0x4, scoped, tag = 'scoped memory for tpu_custom_call.1']
    %12 = vsyncpa [#allocation3], 0
    // Predicated region
    $region2: #{tpu_custom_call.1} parent=1 // pred_check
      _
    $region3: #{tpu_custom_call.1} parent=1 // pred_check_branch
      %14 = sbr.rel (0) target = $region5
    $region4: #{tpu_custom_call.1} parent=1 // pred_region
      _
    $region5: #{tpu_custom_call.1} parent=1 // pred_fallthru
      _
    // Predicated region
    $region6: #{tpu_custom_call.1} parent=1 // pred_check
      _
    $region7: #{tpu_custom_call.1} parent=1 // pred_check_branch
      %16 = sbr.rel (0) target = $region9
    $region8: #{tpu_custom_call.1} parent=1 // pred_region
      _
    $region9: #{tpu_custom_call.1} parent=1 // pred_fallthru
      _
    // Predicated region
    $region10: #{tpu_custom_call.1} parent=1 // pred_check
      _
    $region11: #{tpu_custom_call.1} parent=1 // pred_check_branch
      %18 = sbr.rel (0) target = $region13
    $region12: #{tpu_custom_call.1} parent=1 // pred_region
      _
    $region13: #{tpu_custom_call.1} parent=1 // pred_fallthru
      _
    // Predicated region
    $region14: #{tpu_custom_call.1} parent=1 // pred_check
      _
    $region15: #{tpu_custom_call.1} parent=1 // pred_check_branch
      %20 = sbr.rel (0) target = $region17
    $region16: #{tpu_custom_call.1} parent=1 // pred_region
      _
    $region17: #{tpu_custom_call.1} parent=1 // pred_fallthru
      _
    // Predicated region
    $region18: #{tpu_custom_call.1} parent=1 // pred_check
      _
    $region19: #{tpu_custom_call.1} parent=1 // pred_check_branch
      %22 = sbr.rel (0) target = $region21
    $region20: #{tpu_custom_call.1} parent=1 // pred_region
      _
    $region21: #{tpu_custom_call.1} parent=1 // pred_fallthru
      _
    // Predicated region
    $region22: #{tpu_custom_call.1} parent=1 // pred_check
      _
    $region23: #{tpu_custom_call.1} parent=1 // pred_check_branch
      %24 = sbr.rel (0) target = $region25
    $region24: #{tpu_custom_call.1} parent=1 // pred_region
      _
    $region25: #{tpu_custom_call.1} parent=1 // pred_fallthru
      _
    // Predicated region
    $region26: #{tpu_custom_call.1} parent=1 // pred_check
      _
    $region27: #{tpu_custom_call.1} parent=1 // pred_check_branch
      %26 = sbr.rel (0) target = $region29
    $region28: #{tpu_custom_call.1} parent=1 // pred_region
      _
    $region29: #{tpu_custom_call.1} parent=1 // pred_fallthru
      _
    %v27 = vld [vmem:[%s6] sm:$0xff]
    %v28 = vld [vmem:[%s0] sm:$0xff]
    %v29 = vld [vmem:[%s1] sm:$0xff]
    %v30 = vld [vmem:[%s1 + $0x8] sm:$0xff]
    %v31 = vlaneseq
    %v32 = vshrl.u32 %v31, 7
    %v33 = vsub.s32 0, %v32
    %v34 = vrot.slane %v27, %v33
    %vm35 = vcmask 130048
    %v37 = vsel %vm35, %v28, 0
    %39 = vmatprep.subr.mxu0 0.0
    %40 = vmatpush1.msra.mxu0 %v29
    %41 = vmatprep.subr.mxu0 0.0
    %42 = vmatpush1.msra.mxu0 %v30
    %43 = vmatprep.subr.mxu0 0.0
    %44 = vmatpush1.msra.mxu0 0.0
    %45 = vmatprep.subr.mxu0 0.0
    %46 = vmatpush1.msra.mxu0 0.0
    %47 = vmatprep.subr.mxu0 0.0
    %48 = vmatpush1.msra.mxu0 0.0
    %49 = vmatprep.subr.mxu0 0.0
    %50 = vmatpush1.msra.mxu0 0.0
    %51 = vmatprep.subr.mxu0 0.0
    %52 = vmatpush1.msra.mxu0 0.0
    %53 = vmatprep.subr.mxu0 0.0
    %54 = vmatpush1.msra.mxu0 0.0
    %55 = vmatprep.subr.mxu0 0.0
    %56 = vmatpush1.msra.mxu0 0.0
    %57 = vmatprep.subr.mxu0 0.0
    %58 = vmatpush1.msra.mxu0 0.0
    %59 = vmatprep.subr.mxu0 0.0
    %60 = vmatpush1.msra.mxu0 0.0
    %61 = vmatprep.subr.mxu0 0.0
    %62 = vmatpush1.msra.mxu0 0.0
    %63 = vmatprep.subr.mxu0 0.0
    %64 = vmatpush1.msra.mxu0 0.0
    %65 = vmatprep.subr.mxu0 0.0
    %66 = vmatpush1.msra.mxu0 0.0
    %67 = vmatprep.subr.mxu0 0.0
    %68 = vmatpush1.msra.mxu0 0.0
    %69 = vmatprep.subr.mxu0 0.0
    %70 = vmatpush1.msra.mxu0 0.0
    %71 = vmatprep.subr.mxu0 0.0
    %72 = vmatpush1.msra.mxu0 0.0
    %73 = vmatprep.subr.mxu0 0.0
    %74 = vmatpush1.msra.mxu0 0.0
    %75 = vmatprep.subr.mxu0 0.0
    %76 = vmatpush1.msra.mxu0 0.0
    %77 = vmatprep.subr.mxu0 0.0
    %78 = vmatpush1.msra.mxu0 0.0
    %79 = vmatprep.subr.mxu0 0.0
    %80 = vmatpush1.msra.mxu0 0.0
    %81 = vmatprep.subr.mxu0 0.0
    %82 = vmatpush1.msra.mxu0 0.0
    %83 = vmatprep.subr.mxu0 0.0
    %84 = vmatpush1.msra.mxu0 0.0
    %85 = vmatprep.subr.mxu0 0.0
    %86 = vmatpush1.msra.mxu0 0.0
    %87 = vmatprep.subr.mxu0 0.0
    %88 = vmatpush1.msra.mxu0 0.0
    %89 = vmatprep.subr.mxu0 0.0
    %90 = vmatpush1.msra.mxu0 0.0
    %91 = vmatprep.subr.mxu0 0.0
    %92 = vmatpush1.msra.mxu0 0.0
    %93 = vmatprep.subr.mxu0 0.0
    %94 = vmatpush1.msra.mxu0 0.0
    %95 = vmatprep.subr.mxu0 0.0
    %96 = vmatpush1.msra.mxu0 0.0
    %97 = vmatprep.subr.mxu0 0.0
    %98 = vmatpush1.msra.mxu0 0.0
    %99 = vmatprep.subr.mxu0 0.0
    %100 = vmatpush1.msra.mxu0 0.0
    %101 = vmatprep.subr.mxu0 0.0
    %102 = vmatpush1.msra.mxu0 0.0
    %103 = vmatprep.mubr.f32.mxu0 0.0
    %104 = vmatmul.mubr.f32.gmra.mrb[0].mxu0 %v37
    %v105 = vpop.f32.mrb[0].mxu0
    %v106 = vadd.f32 %v34, %v105
    %v107 = vpop.f32.mrb[0].mxu0
    %108 = vdwg.mxu0
    %v109 = vtanh.pop %v106
    %v110 = vld [vmem:[%s2] sm:$0xff]
    %v111 = vld [vmem:[%s2 + $0x8] sm:$0xff]
    %v112 = vld [vmem:[%s2 + $0x10] sm:$0xff]
    %v113 = vld [vmem:[%s2 + $0x18] sm:$0xff]
    %v114 = vld [vmem:[%s2 + $0x20] sm:$0xff]
    %v115 = vld [vmem:[%s2 + $0x28] sm:$0xff]
    %v116 = vld [vmem:[%s2 + $0x30] sm:$0xff]
    %v117 = vld [vmem:[%s2 + $0x38] sm:$0xff]
    %v118 = vld [vmem:[%s2 + $0x40] sm:$0xff]
    %v119 = vld [vmem:[%s2 + $0x48] sm:$0xff]
    %v120 = vld [vmem:[%s2 + $0x50] sm:$0xff]
    %v121 = vld [vmem:[%s2 + $0x58] sm:$0xff]
    %v122 = vld [vmem:[%s2 + $0x60] sm:$0xff]
    %v123 = vld [vmem:[%s2 + $0x68] sm:$0xff]
    %v124 = vld [vmem:[%s2 + $0x70] sm:$0xff]
    %v125 = vld [vmem:[%s2 + $0x78] sm:$0xff]
    %v126 = vlaneseq
    %v127 = vshrl.u32 %v126, 7
    %v128 = vsub.s32 1, %v127
    %v129 = vrot.slane %v27, %v128
    %130 = vmatprep.subr.mxu0 0.0
    %131 = vmatpush1.msra.mxu0 %v110
    %132 = vmatprep.subr.mxu0 0.0
    %133 = vmatpush1.msra.mxu0 %v111
    %134 = vmatprep.subr.mxu0 0.0
    %135 = vmatpush1.msra.mxu0 %v112
    %136 = vmatprep.subr.mxu0 0.0
    %137 = vmatpush1.msra.mxu0 %v113
    %138 = vmatprep.subr.mxu0 0.0
    %139 = vmatpush1.msra.mxu0 %v114
    %140 = vmatprep.subr.mxu0 0.0
    %141 = vmatpush1.msra.mxu0 %v115
    %142 = vmatprep.subr.mxu0 0.0
    %143 = vmatpush1.msra.mxu0 %v116
    %144 = vmatprep.subr.mxu0 0.0
    %145 = vmatpush1.msra.mxu0 %v117
    %146 = vmatprep.subr.mxu0 0.0
    %147 = vmatpush1.msra.mxu0 %v118
    %148 = vmatprep.subr.mxu0 0.0
    %149 = vmatpush1.msra.mxu0 %v119
    %150 = vmatprep.subr.mxu0 0.0
    %151 = vmatpush1.msra.mxu0 %v120
    %152 = vmatprep.subr.mxu0 0.0
    %153 = vmatpush1.msra.mxu0 %v121
    %154 = vmatprep.subr.mxu0 0.0
    %155 = vmatpush1.msra.mxu0 %v122
    %156 = vmatprep.subr.mxu0 0.0
    %157 = vmatpush1.msra.mxu0 %v123
    %158 = vmatprep.subr.mxu0 0.0
    %159 = vmatpush1.msra.mxu0 %v124
    %160 = vmatprep.subr.mxu0 0.0
    %161 = vmatpush1.msra.mxu0 %v125
    %162 = vmatprep.subr.mxu0 0.0
    %163 = vmatpush1.msra.mxu0 0.0
    %164 = vmatprep.subr.mxu0 0.0
    %165 = vmatpush1.msra.mxu0 0.0
    %166 = vmatprep.subr.mxu0 0.0
    %167 = vmatpush1.msra.mxu0 0.0
    %168 = vmatprep.subr.mxu0 0.0
    %169 = vmatpush1.msra.mxu0 0.0
    %170 = vmatprep.subr.mxu0 0.0
    %171 = vmatpush1.msra.mxu0 0.0
    %172 = vmatprep.subr.mxu0 0.0
    %173 = vmatpush1.msra.mxu0 0.0
    %174 = vmatprep.subr.mxu0 0.0
    %175 = vmatpush1.msra.mxu0 0.0
    %176 = vmatprep.subr.mxu0 0.0
    %177 = vmatpush1.msra.mxu0 0.0
    %178 = vmatprep.subr.mxu0 0.0
    %179 = vmatpush1.msra.mxu0 0.0
    %180 = vmatprep.subr.mxu0 0.0
    %181 = vmatpush1.msra.mxu0 0.0
    %182 = vmatprep.subr.mxu0 0.0
    %183 = vmatpush1.msra.mxu0 0.0
    %184 = vmatprep.subr.mxu0 0.0
    %185 = vmatpush1.msra.mxu0 0.0
    %186 = vmatprep.subr.mxu0 0.0
    %187 = vmatpush1.msra.mxu0 0.0
    %188 = vmatprep.subr.mxu0 0.0
    %189 = vmatpush1.msra.mxu0 0.0
    %190 = vmatprep.subr.mxu0 0.0
    %191 = vmatpush1.msra.mxu0 0.0
    %192 = vmatprep.subr.mxu0 0.0
    %193 = vmatpush1.msra.mxu0 0.0
    %194 = vmatprep.mubr.f32.mxu0 0.0
    %195 = vmatmul.mubr.f32.gmra.mrb[0].mxu0 %v109
    %v196 = vpop.f32.mrb[0].mxu0
    %v197 = vadd.f32 %v129, %v196
    %v198 = vpop.f32.mrb[0].mxu0
    %199 = vdwg.mxu0
    %v200 = vtanh.pop %v197
    %v201 = vld [vmem:[%s3] sm:$0xff]
    %v202 = vld [vmem:[%s3 + $0x8] sm:$0xff]
    %v203 = vld [vmem:[%s3 + $0x10] sm:$0xff]
    %v204 = vld [vmem:[%s3 + $0x18] sm:$0xff]
    %v205 = vld [vmem:[%s3 + $0x20] sm:$0xff]
    %v206 = vld [vmem:[%s3 + $0x28] sm:$0xff]
    %v207 = vld [vmem:[%s3 + $0x30] sm:$0xff]
    %v208 = vld [vmem:[%s3 + $0x38] sm:$0xff]
    %v209 = vld [vmem:[%s3 + $0x40] sm:$0xff]
    %v210 = vld [vmem:[%s3 + $0x48] sm:$0xff]
    %v211 = vld [vmem:[%s3 + $0x50] sm:$0xff]
    %v212 = vld [vmem:[%s3 + $0x58] sm:$0xff]
    %v213 = vld [vmem:[%s3 + $0x60] sm:$0xff]
    %v214 = vld [vmem:[%s3 + $0x68] sm:$0xff]
    %v215 = vld [vmem:[%s3 + $0x70] sm:$0xff]
    %v216 = vld [vmem:[%s3 + $0x78] sm:$0xff]
    %v217 = vlaneseq
    %v218 = vshrl.u32 %v217, 7
    %v219 = vsub.s32 2, %v218
    %v220 = vrot.slane %v27, %v219
    %221 = vmatprep.subr.mxu0 0.0
    %222 = vmatpush1.msra.mxu0 %v201
    %223 = vmatprep.subr.mxu0 0.0
    %224 = vmatpush1.msra.mxu0 %v202
    %225 = vmatprep.subr.mxu0 0.0
    %226 = vmatpush1.msra.mxu0 %v203
    %227 = vmatprep.subr.mxu0 0.0
    %228 = vmatpush1.msra.mxu0 %v204
    %229 = vmatprep.subr.mxu0 0.0
    %230 = vmatpush1.msra.mxu0 %v205
    %231 = vmatprep.subr.mxu0 0.0
    %232 = vmatpush1.msra.mxu0 %v206
    %233 = vmatprep.subr.mxu0 0.0
    %234 = vmatpush1.msra.mxu0 %v207
    %235 = vmatprep.subr.mxu0 0.0
    %236 = vmatpush1.msra.mxu0 %v208
    %237 = vmatprep.subr.mxu0 0.0
    %238 = vmatpush1.msra.mxu0 %v209
    %239 = vmatprep.subr.mxu0 0.0
    %240 = vmatpush1.msra.mxu0 %v210
    %241 = vmatprep.subr.mxu0 0.0
    %242 = vmatpush1.msra.mxu0 %v211
    %243 = vmatprep.subr.mxu0 0.0
    %244 = vmatpush1.msra.mxu0 %v212
    %245 = vmatprep.subr.mxu0 0.0
    %246 = vmatpush1.msra.mxu0 %v213
    %247 = vmatprep.subr.mxu0 0.0
    %248 = vmatpush1.msra.mxu0 %v214
    %249 = vmatprep.subr.mxu0 0.0
    %250 = vmatpush1.msra.mxu0 %v215
    %251 = vmatprep.subr.mxu0 0.0
    %252 = vmatpush1.msra.mxu0 %v216
    %253 = vmatprep.subr.mxu0 0.0
    %254 = vmatpush1.msra.mxu0 0.0
    %255 = vmatprep.subr.mxu0 0.0
    %256 = vmatpush1.msra.mxu0 0.0
    %257 = vmatprep.subr.mxu0 0.0
    %258 = vmatpush1.msra.mxu0 0.0
    %259 = vmatprep.subr.mxu0 0.0
    %260 = vmatpush1.msra.mxu0 0.0
    %261 = vmatprep.subr.mxu0 0.0
    %262 = vmatpush1.msra.mxu0 0.0
    %263 = vmatprep.subr.mxu0 0.0
    %264 = vmatpush1.msra.mxu0 0.0
    %265 = vmatprep.subr.mxu0 0.0
    %266 = vmatpush1.msra.mxu0 0.0
    %267 = vmatprep.subr.mxu0 0.0
    %268 = vmatpush1.msra.mxu0 0.0
    %269 = vmatprep.subr.mxu0 0.0
    %270 = vmatpush1.msra.mxu0 0.0
    %271 = vmatprep.subr.mxu0 0.0
    %272 = vmatpush1.msra.mxu0 0.0
    %273 = vmatprep.subr.mxu0 0.0
    %274 = vmatpush1.msra.mxu0 0.0
    %275 = vmatprep.subr.mxu0 0.0
    %276 = vmatpush1.msra.mxu0 0.0
    %277 = vmatprep.subr.mxu0 0.0
    %278 = vmatpush1.msra.mxu0 0.0
    %279 = vmatprep.subr.mxu0 0.0
    %280 = vmatpush1.msra.mxu0 0.0
    %281 = vmatprep.subr.mxu0 0.0
    %282 = vmatpush1.msra.mxu0 0.0
    %283 = vmatprep.subr.mxu0 0.0
    %284 = vmatpush1.msra.mxu0 0.0
    %285 = vmatprep.mubr.f32.mxu0 0.0
    %286 = vmatmul.mubr.f32.gmra.mrb[0].mxu0 %v200
    %v287 = vpop.f32.mrb[0].mxu0
    %v288 = vadd.f32 %v220, %v287
    %v289 = vpop.f32.mrb[0].mxu0
    %290 = vdwg.mxu0
    %v291 = vtanh.pop %v288
    %v292 = vld [vmem:[%s4] sm:$0xff]
    %v293 = vld [vmem:[%s4 + $0x8] sm:$0xff]
    %v294 = vld [vmem:[%s4 + $0x10] sm:$0xff]
    %v295 = vld [vmem:[%s4 + $0x18] sm:$0xff]
    %v296 = vld [vmem:[%s4 + $0x20] sm:$0xff]
    %v297 = vld [vmem:[%s4 + $0x28] sm:$0xff]
    %v298 = vld [vmem:[%s4 + $0x30] sm:$0xff]
    %v299 = vld [vmem:[%s4 + $0x38] sm:$0xff]
    %v300 = vld [vmem:[%s4 + $0x40] sm:$0xff]
    %v301 = vld [vmem:[%s4 + $0x48] sm:$0xff]
    %v302 = vld [vmem:[%s4 + $0x50] sm:$0xff]
    %v303 = vld [vmem:[%s4 + $0x58] sm:$0xff]
    %v304 = vld [vmem:[%s4 + $0x60] sm:$0xff]
    %v305 = vld [vmem:[%s4 + $0x68] sm:$0xff]
    %v306 = vld [vmem:[%s4 + $0x70] sm:$0xff]
    %v307 = vld [vmem:[%s4 + $0x78] sm:$0xff]
    %v308 = vld [vmem:[%s5] sm:$0xff]
    %v309 = vld [vmem:[%s5 + $0x8] sm:$0xff]
    %v310 = vld [vmem:[%s5 + $0x10] sm:$0xff]
    %v311 = vld [vmem:[%s5 + $0x18] sm:$0xff]
    %v312 = vld [vmem:[%s5 + $0x20] sm:$0xff]
    %v313 = vld [vmem:[%s5 + $0x28] sm:$0xff]
    %v314 = vld [vmem:[%s5 + $0x30] sm:$0xff]
    %v315 = vld [vmem:[%s5 + $0x38] sm:$0xff]
    %vm316 = vcmask 523264
    %v318 = vsel %vm316, %v291, 0
    %320 = vmatprep.subr.mxu0 0.0
    %321 = vmatpush1.msra.mxu0 %v308
    %322 = vmatprep.subr.mxu0 0.0
    %323 = vmatpush1.msra.mxu0 %v309
    %324 = vmatprep.subr.mxu0 0.0
    %325 = vmatpush1.msra.mxu0 %v310
    %326 = vmatprep.subr.mxu0 0.0
    %327 = vmatpush1.msra.mxu0 %v311
    %328 = vmatprep.subr.mxu0 0.0
    %329 = vmatpush1.msra.mxu0 %v312
    %330 = vmatprep.subr.mxu0 0.0
    %331 = vmatpush1.msra.mxu0 %v313
    %332 = vmatprep.subr.mxu0 0.0
    %333 = vmatpush1.msra.mxu0 %v314
    %334 = vmatprep.subr.mxu0 0.0
    %335 = vmatpush1.msra.mxu0 %v315
    %336 = vmatprep.subr.mxu0 0.0
    %337 = vmatpush1.msra.mxu0 0.0
    %338 = vmatprep.subr.mxu0 0.0
    %339 = vmatpush1.msra.mxu0 0.0
    %340 = vmatprep.subr.mxu0 0.0
    %341 = vmatpush1.msra.mxu0 0.0
    %342 = vmatprep.subr.mxu0 0.0
    %343 = vmatpush1.msra.mxu0 0.0
    %344 = vmatprep.subr.mxu0 0.0
    %345 = vmatpush1.msra.mxu0 0.0
    %346 = vmatprep.subr.mxu0 0.0
    %347 = vmatpush1.msra.mxu0 0.0
    %348 = vmatprep.subr.mxu0 0.0
    %349 = vmatpush1.msra.mxu0 0.0
    %350 = vmatprep.subr.mxu0 0.0
    %351 = vmatpush1.msra.mxu0 0.0
    %352 = vmatprep.subr.mxu0 0.0
    %353 = vmatpush1.msra.mxu0 0.0
    %354 = vmatprep.subr.mxu0 0.0
    %355 = vmatpush1.msra.mxu0 0.0
    %356 = vmatprep.subr.mxu0 0.0
    %357 = vmatpush1.msra.mxu0 0.0
    %358 = vmatprep.subr.mxu0 0.0
    %359 = vmatpush1.msra.mxu0 0.0
    %360 = vmatprep.subr.mxu0 0.0
    %361 = vmatpush1.msra.mxu0 0.0
    %362 = vmatprep.subr.mxu0 0.0
    %363 = vmatpush1.msra.mxu0 0.0
    %364 = vmatprep.subr.mxu0 0.0
    %365 = vmatpush1.msra.mxu0 0.0
    %366 = vmatprep.subr.mxu0 0.0
    %367 = vmatpush1.msra.mxu0 0.0
    %368 = vmatprep.subr.mxu0 0.0
    %369 = vmatpush1.msra.mxu0 0.0
    %370 = vmatprep.subr.mxu0 0.0
    %371 = vmatpush1.msra.mxu0 0.0
    %372 = vmatprep.subr.mxu0 0.0
    %373 = vmatpush1.msra.mxu0 0.0
    %374 = vmatprep.subr.mxu0 0.0
    %375 = vmatpush1.msra.mxu0 0.0
    %376 = vmatprep.subr.mxu0 0.0
    %377 = vmatpush1.msra.mxu0 0.0
    %378 = vmatprep.subr.mxu0 0.0
    %379 = vmatpush1.msra.mxu0 0.0
    %380 = vmatprep.subr.mxu0 0.0
    %381 = vmatpush1.msra.mxu0 0.0
    %382 = vmatprep.subr.mxu0 0.0
    %383 = vmatpush1.msra.mxu0 0.0
    %384 = vmatprep.mubr.f32.mxu0 0.0
    %385 = vmatmul.mubr.f32.gmra.mrb[0].mxu0 %v318
    %v386 = vpop.f32.mrb[0].mxu0
    %v387 = vadd.f32 0.0, %v386
    %v388 = vpop.f32.mrb[0].mxu0
    %389 = vdwg.mxu0
    %390 = vmatprep.subr.mxu0 0.0
    %391 = vmatpush1.msra.mxu0 %v292
    %392 = vmatprep.subr.mxu0 0.0
    %393 = vmatpush1.msra.mxu0 %v293
    %394 = vmatprep.subr.mxu0 0.0
    %395 = vmatpush1.msra.mxu0 %v294
    %396 = vmatprep.subr.mxu0 0.0
    %397 = vmatpush1.msra.mxu0 %v295
    %398 = vmatprep.subr.mxu0 0.0
    %399 = vmatpush1.msra.mxu0 %v296
    %400 = vmatprep.subr.mxu0 0.0
    %401 = vmatpush1.msra.mxu0 %v297
    %402 = vmatprep.subr.mxu0 0.0
    %403 = vmatpush1.msra.mxu0 %v298
    %404 = vmatprep.subr.mxu0 0.0
    %405 = vmatpush1.msra.mxu0 %v299
    %406 = vmatprep.subr.mxu0 0.0
    %407 = vmatpush1.msra.mxu0 %v300
    %408 = vmatprep.subr.mxu0 0.0
    %409 = vmatpush1.msra.mxu0 %v301
    %410 = vmatprep.subr.mxu0 0.0
    %411 = vmatpush1.msra.mxu0 %v302
    %412 = vmatprep.subr.mxu0 0.0
    %413 = vmatpush1.msra.mxu0 %v303
    %414 = vmatprep.subr.mxu0 0.0
    %415 = vmatpush1.msra.mxu0 %v304
    %416 = vmatprep.subr.mxu0 0.0
    %417 = vmatpush1.msra.mxu0 %v305
    %418 = vmatprep.subr.mxu0 0.0
    %419 = vmatpush1.msra.mxu0 %v306
    %420 = vmatprep.subr.mxu0 0.0
    %421 = vmatpush1.msra.mxu0 %v307
    %422 = vmatprep.subr.mxu0 0.0
    %423 = vmatpush1.msra.mxu0 0.0
    %424 = vmatprep.subr.mxu0 0.0
    %425 = vmatpush1.msra.mxu0 0.0
    %426 = vmatprep.subr.mxu0 0.0
    %427 = vmatpush1.msra.mxu0 0.0
    %428 = vmatprep.subr.mxu0 0.0
    %429 = vmatpush1.msra.mxu0 0.0
    %430 = vmatprep.subr.mxu0 0.0
    %431 = vmatpush1.msra.mxu0 0.0
    %432 = vmatprep.subr.mxu0 0.0
    %433 = vmatpush1.msra.mxu0 0.0
    %434 = vmatprep.subr.mxu0 0.0
    %435 = vmatpush1.msra.mxu0 0.0
    %436 = vmatprep.subr.mxu0 0.0
    %437 = vmatpush1.msra.mxu0 0.0
    %438 = vmatprep.subr.mxu0 0.0
    %439 = vmatpush1.msra.mxu0 0.0
    %440 = vmatprep.subr.mxu0 0.0
    %441 = vmatpush1.msra.mxu0 0.0
    %442 = vmatprep.subr.mxu0 0.0
    %443 = vmatpush1.msra.mxu0 0.0
    %444 = vmatprep.subr.mxu0 0.0
    %445 = vmatpush1.msra.mxu0 0.0
    %446 = vmatprep.subr.mxu0 0.0
    %447 = vmatpush1.msra.mxu0 0.0
    %448 = vmatprep.subr.mxu0 0.0
    %449 = vmatpush1.msra.mxu0 0.0
    %450 = vmatprep.subr.mxu0 0.0
    %451 = vmatpush1.msra.mxu0 0.0
    %452 = vmatprep.subr.mxu0 0.0
    %453 = vmatpush1.msra.mxu0 0.0
    %454 = vmatprep.mubr.f32.mxu0 0.0
    %455 = vmatmul.mubr.f32.gmra.mrb[0].mxu0 %v200
    %v456 = vpop.f32.mrb[0].mxu0
    %v457 = vadd.f32 %v387, %v456
    %v458 = vpop.f32.mrb[0].mxu0
    %459 = vdwg.mxu0
    %v460 = vlaneseq
    %v461 = vshrl.u32 %v460, 7
    %v462 = vsub.s32 3, %v461
    %v463 = vrot.slane %v27, %v462
    %v464 = vadd.f32 %v457, %v463
    %465 = vst.msk [vmem:[#allocation2] sm:$0xff] %vm35, %v464
    // Predicated region
    $region30: #{tpu_custom_call.1} parent=1 // pred_check
      _
    $region31: #{tpu_custom_call.1} parent=1 // pred_check_branch
      %467 = sbr.rel (0) target = $region33
    $region32: #{tpu_custom_call.1} parent=1 // pred_region
      %s469 = ssub.s32 128, 128
      %470 = vsyncadd [#allocation3], %s469
      %s472 = sshll.u32 [#allocation2], 4
      %s473 = int_to_ptr.vmem [resolvable:$true] %s472
      %475 = dma.vmem_to_hbm [thread:$0]  %s473, 128, %s7, [#allocation3]
    $region33: #{tpu_custom_call.1} parent=1 // pred_fallthru
      _
    // Predicated region
    $region34: #{tpu_custom_call.1} parent=1 // pred_check
      _
    $region35: #{tpu_custom_call.1} parent=1 // pred_check_branch
      %477 = sbr.rel (0) target = $region37
    $region36: #{tpu_custom_call.1} parent=1 // pred_region
      %478 = dma.done [#allocation3], 128
    $region37: #{tpu_custom_call.1} parent=1 // pred_fallthru
      _
    %479 = vsyncpa [#allocation3], 1

</llo_original>
